<compile_context>
chip_gen: v7x
topology: tpu7x:2x2x1
jax: 0.10.0
libtpu: 0.0.40
codegen_flags: <defaults>
</compile_context>

<pallas_src>
import jax
import jax.numpy as jnp
from jax import lax
from jax.experimental import pallas as pl
from jax.experimental.pallas import tpu as pltpu


# ---------------------------------------------------------------------------
# Fused Pallas kernel:
#   sigmoid( relu( [emb5 | emb_0..emb_{n-1} | numeric] @ W1 + b1 ) . w2_row + b2 )
# ---------------------------------------------------------------------------
def _make_fused_kernel(n_cat, e_dim, num_size):
    def kernel(idx_ref, emb5_ref, *rest):
        # idx_ref (SMEM int32, shape (1+n_cat,)): [cat5_idx, cat_idx_0, ...].
        # rest = (*emb_cat_refs, numeric_ref, w1_ref, b1_ref, w2_ref, b2_ref, o_ref)
        emb_refs = rest[:n_cat]
        numeric_ref, w1_ref, b1_ref, w2_ref, b2_ref, o_ref = rest[n_cat:]

        def gather_row(table_ref, idx):
            # One-hot select + sublane reduce: in-kernel gather of a single
            # row from a tiny VMEM-resident embedding table (VPU-only).
            tbl = table_ref[...]                                   # (V, E) f32
            rows = lax.broadcasted_iota(jnp.int32, tbl.shape, 0)   # (V, E) i32
            return jnp.sum(jnp.where(rows == idx, tbl, 0.0),
                           axis=0, keepdims=True)                  # (1, E)

        # First layer as a segmented matmul (== x @ W1 with x the concat),
        # using sublane-aligned STATIC slices of W1 — no lane-dim concat.
        h = jnp.dot(gather_row(emb5_ref, idx_ref[0]),
                    w1_ref[pl.ds(0, e_dim), :],
                    preferred_element_type=jnp.float32)            # (1, H)
        for i in range(n_cat):
            h = h + jnp.dot(gather_row(emb_refs[i], idx_ref[1 + i]),
                            w1_ref[pl.ds((1 + i) * e_dim, e_dim), :],
                            preferred_element_type=jnp.float32)
        h = h + jnp.dot(numeric_ref[...],
                        w1_ref[pl.ds((1 + n_cat) * e_dim, num_size), :],
                        preferred_element_type=jnp.float32)
        h = jnp.maximum(h + b1_ref[...], 0.0)                      # ReLU, (1, H)

        # Second layer: VPU multiply + cross-lane reduce (w2 stored as a row);
        # b2 is a scalar read from SMEM.
        y = jnp.sum(h * w2_ref[...], axis=-1, keepdims=True) + b2_ref[0]
        o_ref[...] = jax.nn.sigmoid(y)                             # (1, 1)

    return kernel


def custom_model_forward(params, numeric_data, cat_data, cat5_data):
    """Fused Pallas forward pass. Returns (1, 1) float32."""
    n_cat = len(params["embs_cat"])
    e_dim = params["emb_cat5"].shape[1]
    num_size = numeric_data.shape[1]
    # Sublane alignment of the static W1 segment slices (f32 tile is (8, 128)).
    assert e_dim % 8 == 0 and num_size % 8 == 0

    # Pack all lookup indices into one SMEM-prefetched int32 vector:
    #   [cat5_idx, cat_idx_0, ..., cat_idx_{n-1}]
    idx = jnp.concatenate(
        [cat5_data.reshape(-1).astype(jnp.int32),
         cat_data.reshape(-1).astype(jnp.int32)], axis=0)          # (1 + n_cat,)

    vmem = pl.BlockSpec(memory_space=pltpu.MemorySpace.VMEM)
    smem = pl.BlockSpec(memory_space=pltpu.MemorySpace.SMEM)

    grid_spec = pltpu.PrefetchScalarGridSpec(
        num_scalar_prefetch=1,                    # packed index vector
        grid=(1,),                                # single block: problem is tiny
        in_specs=[vmem] * (n_cat + 5) + [smem],   # tables, numeric, w1, b1, w2 | b2
        out_specs=vmem,
    )
    return pl.pallas_call(
        _make_fused_kernel(n_cat, e_dim, num_size),
        out_shape=jax.ShapeDtypeStruct((1, 1), jnp.float32),
        grid_spec=grid_spec,
        compiler_params=pltpu.CompilerParams(
            dimension_semantics=("arbitrary",)),
    )(idx,
      params["emb_cat5"], *params["embs_cat"],
      numeric_data, params["w1"], params["b1"], params["w2_row"], params["b2"])


# ---------------------------------------------------------------------------
# Parameters + pure-JAX reference
# ---------------------------------------------------------------------------
def init_params(key, numeric_size, vocab_size, embedding_dim, category_sizes):
    n_cat = len(category_sizes)
    d_in = numeric_size + embedding_dim * (1 + n_cat)
    hidden = 128
    keys = jax.random.split(key, 5 + n_cat)
    return {
        "emb_cat5": 0.1 * jax.random.normal(keys[0], (vocab_size, embedding_dim),
                                            jnp.float32),
        "embs_cat": [0.1 * jax.random.normal(keys[1 + i], (sz, embedding_dim),
                                             jnp.float32)
                     for i, sz in enumerate(category_sizes)],
        "w1": 0.1 * jax.random.normal(keys[1 + n_cat], (d_in, hidden), jnp.float32),
        "b1": 0.1 * jax.random.normal(keys[2 + n_cat], (1, hidden), jnp.float32),
        # w2 stored as a (1, hidden) row so the kernel uses a VPU reduce.
        "w2_row": 0.1 * jax.random.normal(keys[3 + n_cat], (1, hidden), jnp.float32),
        # b2 stored as a (1,) scalar array (lives in SMEM inside the kernel).
        "b2": 0.1 * jax.random.normal(keys[4 + n_cat], (1,), jnp.float32),
    }


def reference_forward(params, numeric_data, cat_data, cat5_data):
    cat5_embed = params["emb_cat5"][cat5_data].reshape(1, -1)
    cat_embeds = [emb[cat_data[:, i]] for i, emb in enumerate(params["embs_cat"])]
    x = jnp.concatenate([cat5_embed] + cat_embeds + [numeric_data], axis=-1)
    h = jnp.maximum(x @ params["w1"] + params["b1"], 0.0)
    y = h @ params["w2_row"].T + params["b2"]
    return jax.nn.sigmoid(y)


if __name__ == "__main__":
    # Small shapes consistent with the module.
    numeric_size = 8
    vocab_size = 32
    embedding_dim = 16
    category_sizes = (5, 7, 9)      # num_categories = 3

    key = jax.random.PRNGKey(0)
    k_param, k_num, k_cat, k_cat5 = jax.random.split(key, 4)

    params = init_params(k_param, numeric_size, vocab_size, embedding_dim,
                         category_sizes)

    # Batch must be 1 (forced by .view((1,-1)) + cat in the PyTorch forward).
    numeric_data = jax.random.normal(k_num, (1, numeric_size), jnp.float32)
    cat_data = jnp.stack(
        [jax.random.randint(jax.random.fold_in(k_cat, i), (1,), 0, sz)
         for i, sz in enumerate(category_sizes)], axis=1)              # (1, 3) int32
    cat5_data = jax.random.randint(k_cat5, (1,), 0, vocab_size)        # (1,) int32

    fwd = jax.jit(custom_model_forward)
    out = fwd(params, numeric_data, cat_data, cat5_data)
    out = jax.block_until_ready(out)

    ref = reference_forward(params, numeric_data, cat_data, cat5_data)
    assert out.shape == (1, 1), out.shape
    assert jnp.allclose(out, ref, atol=1e-5, rtol=1e-5), (out, ref)

    print("KERNEL_OK")
</pallas_src>

<mosaic_0001>
module attributes {stable_mosaic.version = 11 : i64} {
  func.func @kernel(%arg0: i32, %arg1: memref<4xi32, #tpu.memory_space<smem>>, %arg2: memref<32x16xf32, #tpu.memory_space<vmem>>, %arg3: memref<5x16xf32, #tpu.memory_space<vmem>>, %arg4: memref<7x16xf32, #tpu.memory_space<vmem>>, %arg5: memref<9x16xf32, #tpu.memory_space<vmem>>, %arg6: memref<1x8xf32, #tpu.memory_space<vmem>>, %arg7: memref<72x128xf32, #tpu.memory_space<vmem>>, %arg8: memref<1x128xf32, #tpu.memory_space<vmem>>, %arg9: memref<1x128xf32, #tpu.memory_space<vmem>>, %arg10: memref<1xf32, #tpu.memory_space<smem>>, %arg11: memref<1x1xf32, #tpu.memory_space<vmem>>) attributes {dimension_semantics = [#tpu.dimension_semantics<arbitrary>], iteration_bounds = array<i64: 1>, scalar_prefetch = 1 : i64, scratch_operands = 0 : i64, tpu.core_type = #tpu.core_type<tc>, window_params = [{pipeline_mode = #tpu.pipeline_mode<synchronous>, transform_indices = @transform_0, window_bounds = array<i64: 32, 16>}, {pipeline_mode = #tpu.pipeline_mode<synchronous>, transform_indices = @transform_1, window_bounds = array<i64: 5, 16>}, {pipeline_mode = #tpu.pipeline_mode<synchronous>, transform_indices = @transform_2, window_bounds = array<i64: 7, 16>}, {pipeline_mode = #tpu.pipeline_mode<synchronous>, transform_indices = @transform_3, window_bounds = array<i64: 9, 16>}, {pipeline_mode = #tpu.pipeline_mode<synchronous>, transform_indices = @transform_4, window_bounds = array<i64: 1, 8>}, {pipeline_mode = #tpu.pipeline_mode<synchronous>, transform_indices = @transform_5, window_bounds = array<i64: 72, 128>}, {pipeline_mode = #tpu.pipeline_mode<synchronous>, transform_indices = @transform_6, window_bounds = array<i64: 1, 128>}, {pipeline_mode = #tpu.pipeline_mode<synchronous>, transform_indices = @transform_7, window_bounds = array<i64: 1, 128>}, {transform_indices = @transform_8, window_bounds = array<i64: 1>}, {pipeline_mode = #tpu.pipeline_mode<synchronous>, transform_indices = @transform_9, window_bounds = array<i64: 1, 1>}]} {
    %c0 = arith.constant 0 : index
    %0 = memref.load %arg1[%c0] : memref<4xi32, #tpu.memory_space<smem>>
    %c0_0 = arith.constant 0 : index
    %c0_1 = arith.constant 0 : index
    %1 = vector.load %arg2[%c0_0, %c0_1] : memref<32x16xf32, #tpu.memory_space<vmem>>, vector<32x16xf32>
    %2 = tpu.iota {dimensions = array<i32: 0>} : vector<32x16xi32>
    %3 = vector.broadcast %0 : i32 to vector<32x16xi32>
    %4 = arith.cmpi eq, %2, %3 : vector<32x16xi32>
    %cst = arith.constant 0.000000e+00 : f32
    %5 = vector.broadcast %cst : f32 to vector<32x16xf32>
    %6 = arith.select %4, %1, %5 : vector<32x16xi1>, vector<32x16xf32>
    %cst_2 = arith.constant dense<0.000000e+00> : vector<16xf32>
    %7 = vector.multi_reduction <add>, %6, %cst_2 [0] : vector<32x16xf32> to vector<16xf32>
    %8 = vector.shape_cast %7 : vector<16xf32> to vector<1x16xf32>
    %c0_3 = arith.constant 0 : index
    %c0_4 = arith.constant 0 : index
    %9 = vector.load %arg7[%c0_3, %c0_4] : memref<72x128xf32, #tpu.memory_space<vmem>>, vector<16x128xf32>
    %cst_5 = arith.constant dense<0.000000e+00> : vector<1x128xf32>
    %10 = tpu.matmul %8, %9, %cst_5 {dimension_numbers = #tpu.dot_dimension_numbers<[1], [0], [0], [1], [0, 0, 1, 1], [], []>} : vector<1x16xf32>, vector<16x128xf32>, vector<1x128xf32> -> vector<1x128xf32>
    %c1 = arith.constant 1 : index
    %11 = memref.load %arg1[%c1] : memref<4xi32, #tpu.memory_space<smem>>
    %c0_6 = arith.constant 0 : index
    %c0_7 = arith.constant 0 : index
    %12 = vector.load %arg3[%c0_6, %c0_7] : memref<5x16xf32, #tpu.memory_space<vmem>>, vector<5x16xf32>
    %13 = tpu.iota {dimensions = array<i32: 0>} : vector<5x16xi32>
    %14 = vector.broadcast %11 : i32 to vector<5x16xi32>
    %15 = arith.cmpi eq, %13, %14 : vector<5x16xi32>
    %cst_8 = arith.constant 0.000000e+00 : f32
    %16 = vector.broadcast %cst_8 : f32 to vector<5x16xf32>
    %17 = arith.select %15, %12, %16 : vector<5x16xi1>, vector<5x16xf32>
    %cst_9 = arith.constant dense<0.000000e+00> : vector<16xf32>
    %18 = vector.multi_reduction <add>, %17, %cst_9 [0] : vector<5x16xf32> to vector<16xf32>
    %19 = vector.shape_cast %18 : vector<16xf32> to vector<1x16xf32>
    %c16 = arith.constant 16 : index
    %c0_10 = arith.constant 0 : index
    %20 = vector.load %arg7[%c16, %c0_10] : memref<72x128xf32, #tpu.memory_space<vmem>>, vector<16x128xf32>
    %cst_11 = arith.constant dense<0.000000e+00> : vector<1x128xf32>
    %21 = tpu.matmul %19, %20, %cst_11 {dimension_numbers = #tpu.dot_dimension_numbers<[1], [0], [0], [1], [0, 0, 1, 1], [], []>} : vector<1x16xf32>, vector<16x128xf32>, vector<1x128xf32> -> vector<1x128xf32>
    %22 = arith.addf %10, %21 : vector<1x128xf32>
    %c2 = arith.constant 2 : index
    %23 = memref.load %arg1[%c2] : memref<4xi32, #tpu.memory_space<smem>>
    %c0_12 = arith.constant 0 : index
    %c0_13 = arith.constant 0 : index
    %24 = vector.load %arg4[%c0_12, %c0_13] : memref<7x16xf32, #tpu.memory_space<vmem>>, vector<7x16xf32>
    %25 = tpu.iota {dimensions = array<i32: 0>} : vector<7x16xi32>
    %26 = vector.broadcast %23 : i32 to vector<7x16xi32>
    %27 = arith.cmpi eq, %25, %26 : vector<7x16xi32>
    %cst_14 = arith.constant 0.000000e+00 : f32
    %28 = vector.broadcast %cst_14 : f32 to vector<7x16xf32>
    %29 = arith.select %27, %24, %28 : vector<7x16xi1>, vector<7x16xf32>
    %cst_15 = arith.constant dense<0.000000e+00> : vector<16xf32>
    %30 = vector.multi_reduction <add>, %29, %cst_15 [0] : vector<7x16xf32> to vector<16xf32>
    %31 = vector.shape_cast %30 : vector<16xf32> to vector<1x16xf32>
    %c32 = arith.constant 32 : index
    %c0_16 = arith.constant 0 : index
    %32 = vector.load %arg7[%c32, %c0_16] : memref<72x128xf32, #tpu.memory_space<vmem>>, vector<16x128xf32>
    %cst_17 = arith.constant dense<0.000000e+00> : vector<1x128xf32>
    %33 = tpu.matmul %31, %32, %cst_17 {dimension_numbers = #tpu.dot_dimension_numbers<[1], [0], [0], [1], [0, 0, 1, 1], [], []>} : vector<1x16xf32>, vector<16x128xf32>, vector<1x128xf32> -> vector<1x128xf32>
    %34 = arith.addf %22, %33 : vector<1x128xf32>
    %c3 = arith.constant 3 : index
    %35 = memref.load %arg1[%c3] : memref<4xi32, #tpu.memory_space<smem>>
    %c0_18 = arith.constant 0 : index
    %c0_19 = arith.constant 0 : index
    %36 = vector.load %arg5[%c0_18, %c0_19] : memref<9x16xf32, #tpu.memory_space<vmem>>, vector<9x16xf32>
    %37 = tpu.iota {dimensions = array<i32: 0>} : vector<9x16xi32>
    %38 = vector.broadcast %35 : i32 to vector<9x16xi32>
    %39 = arith.cmpi eq, %37, %38 : vector<9x16xi32>
    %cst_20 = arith.constant 0.000000e+00 : f32
    %40 = vector.broadcast %cst_20 : f32 to vector<9x16xf32>
    %41 = arith.select %39, %36, %40 : vector<9x16xi1>, vector<9x16xf32>
    %cst_21 = arith.constant dense<0.000000e+00> : vector<16xf32>
    %42 = vector.multi_reduction <add>, %41, %cst_21 [0] : vector<9x16xf32> to vector<16xf32>
    %43 = vector.shape_cast %42 : vector<16xf32> to vector<1x16xf32>
    %c48 = arith.constant 48 : index
    %c0_22 = arith.constant 0 : index
    %44 = vector.load %arg7[%c48, %c0_22] : memref<72x128xf32, #tpu.memory_space<vmem>>, vector<16x128xf32>
    %cst_23 = arith.constant dense<0.000000e+00> : vector<1x128xf32>
    %45 = tpu.matmul %43, %44, %cst_23 {dimension_numbers = #tpu.dot_dimension_numbers<[1], [0], [0], [1], [0, 0, 1, 1], [], []>} : vector<1x16xf32>, vector<16x128xf32>, vector<1x128xf32> -> vector<1x128xf32>
    %46 = arith.addf %34, %45 : vector<1x128xf32>
    %c0_24 = arith.constant 0 : index
    %c0_25 = arith.constant 0 : index
    %47 = vector.load %arg6[%c0_24, %c0_25] : memref<1x8xf32, #tpu.memory_space<vmem>>, vector<1x8xf32>
    %c64 = arith.constant 64 : index
    %c0_26 = arith.constant 0 : index
    %48 = vector.load %arg7[%c64, %c0_26] : memref<72x128xf32, #tpu.memory_space<vmem>>, vector<8x128xf32>
    %cst_27 = arith.constant dense<0.000000e+00> : vector<1x128xf32>
    %49 = tpu.matmul %47, %48, %cst_27 {dimension_numbers = #tpu.dot_dimension_numbers<[1], [0], [0], [1], [0, 0, 1, 1], [], []>} : vector<1x8xf32>, vector<8x128xf32>, vector<1x128xf32> -> vector<1x128xf32>
    %50 = arith.addf %46, %49 : vector<1x128xf32>
    %c0_28 = arith.constant 0 : index
    %c0_29 = arith.constant 0 : index
    %51 = vector.load %arg8[%c0_28, %c0_29] : memref<1x128xf32, #tpu.memory_space<vmem>>, vector<1x128xf32>
    %52 = arith.addf %50, %51 : vector<1x128xf32>
    %cst_30 = arith.constant 0.000000e+00 : f32
    %53 = vector.broadcast %cst_30 : f32 to vector<1x128xf32>
    %54 = arith.maximumf %52, %53 : vector<1x128xf32>
    %c0_31 = arith.constant 0 : index
    %c0_32 = arith.constant 0 : index
    %55 = vector.load %arg9[%c0_31, %c0_32] : memref<1x128xf32, #tpu.memory_space<vmem>>, vector<1x128xf32>
    %56 = arith.mulf %54, %55 : vector<1x128xf32>
    %cst_33 = arith.constant dense<0.000000e+00> : vector<1xf32>
    %57 = vector.multi_reduction <add>, %56, %cst_33 [1] : vector<1x128xf32> to vector<1xf32>
    %58 = vector.shape_cast %57 : vector<1xf32> to vector<1x1xf32>
    %c0_34 = arith.constant 0 : index
    %59 = memref.load %arg10[%c0_34] : memref<1xf32, #tpu.memory_space<smem>>
    %60 = vector.broadcast %59 : f32 to vector<1x1xf32>
    %61 = arith.addf %58, %60 : vector<1x1xf32>
    %62 = arith.negf %61 : vector<1x1xf32>
    %63 = math.exp %62 : vector<1x1xf32>
    %cst_35 = arith.constant 1.000000e+00 : f32
    %64 = vector.broadcast %cst_35 : f32 to vector<1x1xf32>
    %65 = arith.addf %64, %63 : vector<1x1xf32>
    %66 = arith.divf %64, %65 : vector<1x1xf32>
    %c0_36 = arith.constant 0 : index
    %c0_37 = arith.constant 0 : index
    %67 = vector.load %arg11[%c0_36, %c0_37] : memref<1x1xf32, #tpu.memory_space<vmem>>, vector<1x1xf32>
    tpu.vector_store %arg11[%c0_36, %c0_37], %66 {strides = array<i32>} : memref<1x1xf32, #tpu.memory_space<vmem>>, vector<1x1xf32>,
    return
  }
  func.func @transform_0(%arg0: i32, %arg1: memref<4xi32, #tpu.memory_space<smem>>) -> (i32, i32) {
    %c0_i32 = arith.constant 0 : i32
    %c0_i32_0 = arith.constant 0 : i32
    %c0_i32_1 = arith.constant 0 : i32
    return %c0_i32, %c0_i32_0 : i32, i32
  }
  func.func @transform_1(%arg0: i32, %arg1: memref<4xi32, #tpu.memory_space<smem>>) -> (i32, i32) {
    %c0_i32 = arith.constant 0 : i32
    %c0_i32_0 = arith.constant 0 : i32
    %c0_i32_1 = arith.constant 0 : i32
    return %c0_i32, %c0_i32_0 : i32, i32
  }
  func.func @transform_2(%arg0: i32, %arg1: memref<4xi32, #tpu.memory_space<smem>>) -> (i32, i32) {
    %c0_i32 = arith.constant 0 : i32
    %c0_i32_0 = arith.constant 0 : i32
    %c0_i32_1 = arith.constant 0 : i32
    return %c0_i32, %c0_i32_0 : i32, i32
  }
  func.func @transform_3(%arg0: i32, %arg1: memref<4xi32, #tpu.memory_space<smem>>) -> (i32, i32) {
    %c0_i32 = arith.constant 0 : i32
    %c0_i32_0 = arith.constant 0 : i32
    %c0_i32_1 = arith.constant 0 : i32
    return %c0_i32, %c0_i32_0 : i32, i32
  }
  func.func @transform_4(%arg0: i32, %arg1: memref<4xi32, #tpu.memory_space<smem>>) -> (i32, i32) {
    %c0_i32 = arith.constant 0 : i32
    %c0_i32_0 = arith.constant 0 : i32
    %c0_i32_1 = arith.constant 0 : i32
    return %c0_i32, %c0_i32_0 : i32, i32
  }
  func.func @transform_5(%arg0: i32, %arg1: memref<4xi32, #tpu.memory_space<smem>>) -> (i32, i32) {
    %c0_i32 = arith.constant 0 : i32
    %c0_i32_0 = arith.constant 0 : i32
    %c0_i32_1 = arith.constant 0 : i32
    return %c0_i32, %c0_i32_0 : i32, i32
  }
  func.func @transform_6(%arg0: i32, %arg1: memref<4xi32, #tpu.memory_space<smem>>) -> (i32, i32) {
    %c0_i32 = arith.constant 0 : i32
    %c0_i32_0 = arith.constant 0 : i32
    %c0_i32_1 = arith.constant 0 : i32
    return %c0_i32, %c0_i32_0 : i32, i32
  }
  func.func @transform_7(%arg0: i32, %arg1: memref<4xi32, #tpu.memory_space<smem>>) -> (i32, i32) {
    %c0_i32 = arith.constant 0 : i32
    %c0_i32_0 = arith.constant 0 : i32
    %c0_i32_1 = arith.constant 0 : i32
    return %c0_i32, %c0_i32_0 : i32, i32
  }
  func.func @transform_8(%arg0: i32, %arg1: memref<4xi32, #tpu.memory_space<smem>>) -> i32 {
    %c0_i32 = arith.constant 0 : i32
    %c0_i32_0 = arith.constant 0 : i32
    return %c0_i32 : i32
  }
  func.func @transform_9(%arg0: i32, %arg1: memref<4xi32, #tpu.memory_space<smem>>) -> (i32, i32) {
    %c0_i32 = arith.constant 0 : i32
    %c0_i32_0 = arith.constant 0 : i32
    %c0_i32_1 = arith.constant 0 : i32
    return %c0_i32, %c0_i32_0 : i32, i32
  }
}

</mosaic_0001>

<llo_original>
// kernel: custom_model_forward.1
$region0: #{custom_model_forward.1}
  #allocation0 [shape = 'u32[]', space=smem, size = 0x4, offset = 0x4, fixed_abs, tag = 'smem constant byte address 0x4 - core index']
  #allocation1 [shape = 'u32[144,128]{1,0:T(1,128)}', space=vmem, size = 0x12000, scoped, tag = 'internal scratch']
  #allocation2 [shape = 's32[1]{0}', space=sflag, size = 0x4, scoped, tag = 'scoped memory for custom_model_forward.1']
  #allocation3 [shape = 'u8[512]{0}', space=smem, size = 0x200, scoped, tag = 'prefetched SMEM operand 0']
  #allocation4 [shape = 'f32[1]{0:T(128)S(6)}', space=smem, size = 0x200, scoped, tag = 'scoped memory for custom_model_forward.1']
  %s0 = inlined_call_operand.vmem [shape: s32[4], index: 0, kind: input, shape index: {}]
  %s1 = inlined_call_operand.vmem [shape: f32[32,16], index: 1, kind: input, shape index: {}]
  %s2 = inlined_call_operand.vmem [shape: f32[5,16], index: 2, kind: input, shape index: {}]
  %s3 = inlined_call_operand.hbm [shape: f32[7,16], index: 3, kind: input, shape index: {}]
  %s4 = inlined_call_operand.hbm [shape: f32[9,16], index: 4, kind: input, shape index: {}]
  %s5 = inlined_call_operand.vmem [shape: f32[1,8], index: 5, kind: input, shape index: {}]
  %s6 = inlined_call_operand.vmem [shape: f32[72,128], index: 6, kind: input, shape index: {}]
  %s7 = inlined_call_operand.vmem [shape: f32[1,128], index: 7, kind: input, shape index: {}]
  %s8 = inlined_call_operand.vmem [shape: f32[1,128], index: 8, kind: input, shape index: {}]
  %s9 = inlined_call_operand.<no memory space> [shape: f32[1], index: 9, kind: input, shape index: {}]
  %s10 = inlined_call_operand.hbm [shape: f32[1,1], index: 10, kind: output, shape index: {}]
  %s11 = sld [smem:[#allocation0]]
  $region54: #{custom_model_forward.1} parent=0
    _
  %s13 = ssub.s32 1, %s11
  %s14 = scalar_select 0, %s13, %s11
  %s15 = sshll.u32 %s0, 4
  %s16 = int_to_ptr.vmem [resolvable:$true] %s15
  %18 = dma.vmem_to_smem %s16, 16, [#allocation3], [#allocation2]
  %19 = sst [smem:[#allocation4]] %s9
  %20 = dma.done [#allocation2], 16
  %21 = sfence
  $region1: #{custom_model_forward.1} parent=0
    #allocation5 [shape = 'u8[4096]{0}', space=vmem, size = 0x1000, scoped, tag = 'input window, operand 3, single buffered']
    #allocation6 [shape = 's32[1]{0}', space=sflag, size = 0x4, scoped, tag = 'scoped memory for custom_model_forward.1']
    #allocation7 [shape = 's32[1]{0}', space=sflag, size = 0x4, scoped, tag = 'scoped memory for custom_model_forward.1']
    #allocation8 [shape = 'u8[8192]{0}', space=vmem, size = 0x2000, scoped, tag = 'input window, operand 4, single buffered']
    #allocation9 [shape = 's32[1]{0}', space=sflag, size = 0x4, scoped, tag = 'scoped memory for custom_model_forward.1']
    #allocation10 [shape = 'u8[512]{0}', space=vmem, size = 0x400, scoped, tag = 'output window, operand 0, single buffered']
    %22 = vsyncpa [#allocation6], 0
    %23 = vsyncpa [#allocation9], 0
    %24 = vsyncpa [#allocation7], 0
    // Predicated region
    $region2: #{custom_model_forward.1} parent=1 // pred_check
      _
    $region3: #{custom_model_forward.1} parent=1 // pred_check_branch
      %26 = sbr.rel (0) target = $region5
    $region4: #{custom_model_forward.1} parent=1 // pred_region
      _
    $region5: #{custom_model_forward.1} parent=1 // pred_fallthru
      _
    // Predicated region
    $region6: #{custom_model_forward.1} parent=1 // pred_check
      _
    $region7: #{custom_model_forward.1} parent=1 // pred_check_branch
      %28 = sbr.rel (0) target = $region9
    $region8: #{custom_model_forward.1} parent=1 // pred_region
      _
    $region9: #{custom_model_forward.1} parent=1 // pred_fallthru
      _
    // Predicated region
    $region10: #{custom_model_forward.1} parent=1 // pred_check
      _
    $region11: #{custom_model_forward.1} parent=1 // pred_check_branch
      %30 = sbr.rel (0) target = $region13
    $region12: #{custom_model_forward.1} parent=1 // pred_region
      %s32 = ssub.s32 128, 128
      %33 = vsyncadd [#allocation6], %s32
      %s35 = sshll.u32 [#allocation5], 4
      %s36 = int_to_ptr.vmem [resolvable:$true] %s35
      %38 = dma.hbm_to_vmem [thread:$0]  %s3, 128, %s36, [#allocation6]
    $region13: #{custom_model_forward.1} parent=1 // pred_fallthru
      _
    // Predicated region
    $region14: #{custom_model_forward.1} parent=1 // pred_check
      _
    $region15: #{custom_model_forward.1} parent=1 // pred_check_branch
      %40 = sbr.rel (0) target = $region17
    $region16: #{custom_model_forward.1} parent=1 // pred_region
      %s42 = ssub.s32 256, 256
      %43 = vsyncadd [#allocation9], %s42
      %s44 = sshll.u32 [#allocation8], 4
      %s45 = int_to_ptr.vmem [resolvable:$true] %s44
      %50 = dma.hbm_to_vmem [thread:$0]  %s4, 256, %s45, [#allocation9], 128, 128, 8
    $region17: #{custom_model_forward.1} parent=1 // pred_fallthru
      _
    // Predicated region
    $region18: #{custom_model_forward.1} parent=1 // pred_check
      _
    $region19: #{custom_model_forward.1} parent=1 // pred_check_branch
      %52 = sbr.rel (0) target = $region21
    $region20: #{custom_model_forward.1} parent=1 // pred_region
      _
    $region21: #{custom_model_forward.1} parent=1 // pred_fallthru
      _
    // Predicated region
    $region22: #{custom_model_forward.1} parent=1 // pred_check
      _
    $region23: #{custom_model_forward.1} parent=1 // pred_check_branch
      %54 = sbr.rel (0) target = $region25
    $region24: #{custom_model_forward.1} parent=1 // pred_region
      _
    $region25: #{custom_model_forward.1} parent=1 // pred_fallthru
      _
    // Predicated region
    $region26: #{custom_model_forward.1} parent=1 // pred_check
      _
    $region27: #{custom_model_forward.1} parent=1 // pred_check_branch
      %56 = sbr.rel (0) target = $region29
    $region28: #{custom_model_forward.1} parent=1 // pred_region
      _
    $region29: #{custom_model_forward.1} parent=1 // pred_fallthru
      _
    // Predicated region
    $region30: #{custom_model_forward.1} parent=1 // pred_check
      _
    $region31: #{custom_model_forward.1} parent=1 // pred_check_branch
      %58 = sbr.rel (0) target = $region33
    $region32: #{custom_model_forward.1} parent=1 // pred_region
      _
    $region33: #{custom_model_forward.1} parent=1 // pred_fallthru
      _
    // Predicated region
    $region34: #{custom_model_forward.1} parent=1 // pred_check
      _
    $region35: #{custom_model_forward.1} parent=1 // pred_check_branch
      %60 = sbr.rel (0) target = $region37
    $region36: #{custom_model_forward.1} parent=1 // pred_region
      _
    $region37: #{custom_model_forward.1} parent=1 // pred_fallthru
      _
    // Predicated region
    $region38: #{custom_model_forward.1} parent=1 // pred_check
      _
    $region39: #{custom_model_forward.1} parent=1 // pred_check_branch
      %62 = sbr.rel (0) target = $region41
    $region40: #{custom_model_forward.1} parent=1 // pred_region
      %63 = dma.done [#allocation6], 128
    $region41: #{custom_model_forward.1} parent=1 // pred_fallthru
      _
    // Predicated region
    $region42: #{custom_model_forward.1} parent=1 // pred_check
      _
    $region43: #{custom_model_forward.1} parent=1 // pred_check_branch
      %65 = sbr.rel (0) target = $region45
    $region44: #{custom_model_forward.1} parent=1 // pred_region
      %66 = dma.done [#allocation9], 256
    $region45: #{custom_model_forward.1} parent=1 // pred_fallthru
      _
    %s67 = sld [smem:[#allocation3]]
    %v68 = vld [vmem:[%s1] sm:$0xff]
    %v69 = vld [vmem:[%s1 + $0x8] sm:$0xff]
    %v70 = vld [vmem:[%s1 + $0x10] sm:$0xff]
    %v71 = vld [vmem:[%s1 + $0x18] sm:$0xff]
    %v72 = vlaneseq
    %v73 = vshrl.u32 %v72, 7
    %v74 = vadd.s32 %v73, 8
    %v75 = vadd.s32 %v73, 16
    %v76 = vadd.s32 %v73, 24
    %v77 = vstv %s67
    %vm78 = vcmp.eq.s32.totalorder %v73, %v77
    %vm79 = vcmp.eq.s32.totalorder %v74, %v77
    %vm80 = vcmp.eq.s32.totalorder %v75, %v77
    %vm81 = vcmp.eq.s32.totalorder %v76, %v77
    %v82 = vsel %vm78, %v68, 0.0
    %v83 = vsel %vm79, %v69, 0.0
    %v84 = vsel %vm80, %v70, 0.0
    %v85 = vsel %vm81, %v71, 0.0
    %vm86 = vcmask 130048
    %v87 = vsel %vm86, %v82, 0.0
    %v88 = vsel %vm86, %v83, 0.0
    %v89 = vadd.f32 %v87, %v88
    %v90 = vsel %vm86, %v84, 0.0
    %v91 = vadd.f32 %v89, %v90
    %v92 = vsel %vm86, %v85, 0.0
    %v93 = vadd.f32 %v91, %v92
    %v94 = vrot.slane %v93, 4
    %v95 = vadd.f32 %v93, %v94
    %v96 = vrot.slane %v95, 2
    %v97 = vadd.f32 %v95, %v96
    %v98 = vrot.slane %v97, 1
    %v99 = vadd.f32 %v97, %v98
    %v100 = vld [vmem:[%s6] sm:$0xff]
    %v101 = vld [vmem:[%s6 + $0x8] sm:$0xff]
    %s102 = sld [smem:[#allocation3 + $0x1]]
    %v103 = vld [vmem:[%s2] sm:$0x1f]
    %v104 = vstv %s102
    %vm105 = vcmp.eq.s32.totalorder %v73, %v104
    %v106 = vsel %vm105, %v103, 0.0
    %vm107 = vcmask 126976
    %v108 = vsel %vm107, %v106, 0.0
    %v109 = vrot.slane %v108, 4
    %v110 = vadd.f32 %v108, %v109
    %v111 = vrot.slane %v110, 2
    %v112 = vadd.f32 %v110, %v111
    %v113 = vrot.slane %v112, 1
    %v114 = vadd.f32 %v112, %v113
    %v115 = vld [vmem:[%s6 + $0x10] sm:$0xff]
    %v116 = vld [vmem:[%s6 + $0x18] sm:$0xff]
    %v118 = vsel %vm86, %v114, 0
    %120 = vmatprep.subr.mxu0 0.0
    %121 = vmatpush1.msra.mxu0 %v115
    %122 = vmatprep.subr.mxu0 0.0
    %123 = vmatpush1.msra.mxu0 %v116
    %124 = vmatprep.subr.mxu0 0.0
    %125 = vmatpush1.msra.mxu0 0.0
    %126 = vmatprep.subr.mxu0 0.0
    %127 = vmatpush1.msra.mxu0 0.0
    %128 = vmatprep.subr.mxu0 0.0
    %129 = vmatpush1.msra.mxu0 0.0
    %130 = vmatprep.subr.mxu0 0.0
    %131 = vmatpush1.msra.mxu0 0.0
    %132 = vmatprep.subr.mxu0 0.0
    %133 = vmatpush1.msra.mxu0 0.0
    %134 = vmatprep.subr.mxu0 0.0
    %135 = vmatpush1.msra.mxu0 0.0
    %136 = vmatprep.subr.mxu0 0.0
    %137 = vmatpush1.msra.mxu0 0.0
    %138 = vmatprep.subr.mxu0 0.0
    %139 = vmatpush1.msra.mxu0 0.0
    %140 = vmatprep.subr.mxu0 0.0
    %141 = vmatpush1.msra.mxu0 0.0
    %142 = vmatprep.subr.mxu0 0.0
    %143 = vmatpush1.msra.mxu0 0.0
    %144 = vmatprep.subr.mxu0 0.0
    %145 = vmatpush1.msra.mxu0 0.0
    %146 = vmatprep.subr.mxu0 0.0
    %147 = vmatpush1.msra.mxu0 0.0
    %148 = vmatprep.subr.mxu0 0.0
    %149 = vmatpush1.msra.mxu0 0.0
    %150 = vmatprep.subr.mxu0 0.0
    %151 = vmatpush1.msra.mxu0 0.0
    %152 = vmatprep.subr.mxu0 0.0
    %153 = vmatpush1.msra.mxu0 0.0
    %154 = vmatprep.subr.mxu0 0.0
    %155 = vmatpush1.msra.mxu0 0.0
    %156 = vmatprep.subr.mxu0 0.0
    %157 = vmatpush1.msra.mxu0 0.0
    %158 = vmatprep.subr.mxu0 0.0
    %159 = vmatpush1.msra.mxu0 0.0
    %160 = vmatprep.subr.mxu0 0.0
    %161 = vmatpush1.msra.mxu0 0.0
    %162 = vmatprep.subr.mxu0 0.0
    %163 = vmatpush1.msra.mxu0 0.0
    %164 = vmatprep.subr.mxu0 0.0
    %165 = vmatpush1.msra.mxu0 0.0
    %166 = vmatprep.subr.mxu0 0.0
    %167 = vmatpush1.msra.mxu0 0.0
    %168 = vmatprep.subr.mxu0 0.0
    %169 = vmatpush1.msra.mxu0 0.0
    %170 = vmatprep.subr.mxu0 0.0
    %171 = vmatpush1.msra.mxu0 0.0
    %172 = vmatprep.subr.mxu0 0.0
    %173 = vmatpush1.msra.mxu0 0.0
    %174 = vmatprep.subr.mxu0 0.0
    %175 = vmatpush1.msra.mxu0 0.0
    %176 = vmatprep.subr.mxu0 0.0
    %177 = vmatpush1.msra.mxu0 0.0
    %178 = vmatprep.subr.mxu0 0.0
    %179 = vmatpush1.msra.mxu0 0.0
    %180 = vmatprep.subr.mxu0 0.0
    %181 = vmatpush1.msra.mxu0 0.0
    %182 = vmatprep.subr.mxu0 0.0
    %183 = vmatpush1.msra.mxu0 0.0
    %184 = vmatprep.mubr.f32.mxu0 0.0
    %185 = vmatmul.mubr.f32.gmra.mrb[0].mxu0 %v118
    %v186 = vpop.f32.mrb[0].mxu0
    %v187 = vadd.f32 0.0, %v186
    %v188 = vpop.f32.mrb[0].mxu0
    %189 = vdwg.mxu0
    %v191 = vsel %vm86, %v99, 0
    %193 = vmatprep.subr.mxu0 0.0
    %194 = vmatpush1.msra.mxu0 %v100
    %195 = vmatprep.subr.mxu0 0.0
    %196 = vmatpush1.msra.mxu0 %v101
    %197 = vmatprep.subr.mxu0 0.0
    %198 = vmatpush1.msra.mxu0 0.0
    %199 = vmatprep.subr.mxu0 0.0
    %200 = vmatpush1.msra.mxu0 0.0
    %201 = vmatprep.subr.mxu0 0.0
    %202 = vmatpush1.msra.mxu0 0.0
    %203 = vmatprep.subr.mxu0 0.0
    %204 = vmatpush1.msra.mxu0 0.0
    %205 = vmatprep.subr.mxu0 0.0
    %206 = vmatpush1.msra.mxu0 0.0
    %207 = vmatprep.subr.mxu0 0.0
    %208 = vmatpush1.msra.mxu0 0.0
    %209 = vmatprep.subr.mxu0 0.0
    %210 = vmatpush1.msra.mxu0 0.0
    %211 = vmatprep.subr.mxu0 0.0
    %212 = vmatpush1.msra.mxu0 0.0
    %213 = vmatprep.subr.mxu0 0.0
    %214 = vmatpush1.msra.mxu0 0.0
    %215 = vmatprep.subr.mxu0 0.0
    %216 = vmatpush1.msra.mxu0 0.0
    %217 = vmatprep.subr.mxu0 0.0
    %218 = vmatpush1.msra.mxu0 0.0
    %219 = vmatprep.subr.mxu0 0.0
    %220 = vmatpush1.msra.mxu0 0.0
    %221 = vmatprep.subr.mxu0 0.0
    %222 = vmatpush1.msra.mxu0 0.0
    %223 = vmatprep.subr.mxu0 0.0
    %224 = vmatpush1.msra.mxu0 0.0
    %225 = vmatprep.subr.mxu0 0.0
    %226 = vmatpush1.msra.mxu0 0.0
    %227 = vmatprep.subr.mxu0 0.0
    %228 = vmatpush1.msra.mxu0 0.0
    %229 = vmatprep.subr.mxu0 0.0
    %230 = vmatpush1.msra.mxu0 0.0
    %231 = vmatprep.subr.mxu0 0.0
    %232 = vmatpush1.msra.mxu0 0.0
    %233 = vmatprep.subr.mxu0 0.0
    %234 = vmatpush1.msra.mxu0 0.0
    %235 = vmatprep.subr.mxu0 0.0
    %236 = vmatpush1.msra.mxu0 0.0
    %237 = vmatprep.subr.mxu0 0.0
    %238 = vmatpush1.msra.mxu0 0.0
    %239 = vmatprep.subr.mxu0 0.0
    %240 = vmatpush1.msra.mxu0 0.0
    %241 = vmatprep.subr.mxu0 0.0
    %242 = vmatpush1.msra.mxu0 0.0
    %243 = vmatprep.subr.mxu0 0.0
    %244 = vmatpush1.msra.mxu0 0.0
    %245 = vmatprep.subr.mxu0 0.0
    %246 = vmatpush1.msra.mxu0 0.0
    %247 = vmatprep.subr.mxu0 0.0
    %248 = vmatpush1.msra.mxu0 0.0
    %249 = vmatprep.subr.mxu0 0.0
    %250 = vmatpush1.msra.mxu0 0.0
    %251 = vmatprep.subr.mxu0 0.0
    %252 = vmatpush1.msra.mxu0 0.0
    %253 = vmatprep.subr.mxu0 0.0
    %254 = vmatpush1.msra.mxu0 0.0
    %255 = vmatprep.subr.mxu0 0.0
    %256 = vmatpush1.msra.mxu0 0.0
    %257 = vmatprep.mubr.f32.mxu0 0.0
    %258 = vmatmul.mubr.f32.gmra.mrb[0].mxu0 %v191
    %v259 = vpop.f32.mrb[0].mxu0
    %v260 = vadd.f32 %v187, %v259
    %v261 = vpop.f32.mrb[0].mxu0
    %262 = vdwg.mxu0
    %s263 = sld [smem:[#allocation3 + $0x2]]
    %v264 = vld [vmem:[#allocation5] sm:$0x7f]
    %v265 = vstv %s263
    %vm266 = vcmp.eq.s32.totalorder %v73, %v265
    %v267 = vsel %vm266, %v264, 0.0
    %vm268 = vcmask 129024
    %v269 = vsel %vm268, %v267, 0.0
    %v270 = vrot.slane %v269, 4
    %v271 = vadd.f32 %v269, %v270
    %v272 = vrot.slane %v271, 2
    %v273 = vadd.f32 %v271, %v272
    %v274 = vrot.slane %v273, 1
    %v275 = vadd.f32 %v273, %v274
    %v276 = vld [vmem:[%s6 + $0x20] sm:$0xff]
    %v277 = vld [vmem:[%s6 + $0x28] sm:$0xff]
    %v279 = vsel %vm86, %v275, 0
    %281 = vmatprep.subr.mxu0 0.0
    %282 = vmatpush1.msra.mxu0 %v276
    %283 = vmatprep.subr.mxu0 0.0
    %284 = vmatpush1.msra.mxu0 %v277
    %285 = vmatprep.subr.mxu0 0.0
    %286 = vmatpush1.msra.mxu0 0.0
    %287 = vmatprep.subr.mxu0 0.0
    %288 = vmatpush1.msra.mxu0 0.0
    %289 = vmatprep.subr.mxu0 0.0
    %290 = vmatpush1.msra.mxu0 0.0
    %291 = vmatprep.subr.mxu0 0.0
    %292 = vmatpush1.msra.mxu0 0.0
    %293 = vmatprep.subr.mxu0 0.0
    %294 = vmatpush1.msra.mxu0 0.0
    %295 = vmatprep.subr.mxu0 0.0
    %296 = vmatpush1.msra.mxu0 0.0
    %297 = vmatprep.subr.mxu0 0.0
    %298 = vmatpush1.msra.mxu0 0.0
    %299 = vmatprep.subr.mxu0 0.0
    %300 = vmatpush1.msra.mxu0 0.0
    %301 = vmatprep.subr.mxu0 0.0
    %302 = vmatpush1.msra.mxu0 0.0
    %303 = vmatprep.subr.mxu0 0.0
    %304 = vmatpush1.msra.mxu0 0.0
    %305 = vmatprep.subr.mxu0 0.0
    %306 = vmatpush1.msra.mxu0 0.0
    %307 = vmatprep.subr.mxu0 0.0
    %308 = vmatpush1.msra.mxu0 0.0
    %309 = vmatprep.subr.mxu0 0.0
    %310 = vmatpush1.msra.mxu0 0.0
    %311 = vmatprep.subr.mxu0 0.0
    %312 = vmatpush1.msra.mxu0 0.0
    %313 = vmatprep.subr.mxu0 0.0
    %314 = vmatpush1.msra.mxu0 0.0
    %315 = vmatprep.subr.mxu0 0.0
    %316 = vmatpush1.msra.mxu0 0.0
    %317 = vmatprep.subr.mxu0 0.0
    %318 = vmatpush1.msra.mxu0 0.0
    %319 = vmatprep.subr.mxu0 0.0
    %320 = vmatpush1.msra.mxu0 0.0
    %321 = vmatprep.subr.mxu0 0.0
    %322 = vmatpush1.msra.mxu0 0.0
    %323 = vmatprep.subr.mxu0 0.0
    %324 = vmatpush1.msra.mxu0 0.0
    %325 = vmatprep.subr.mxu0 0.0
    %326 = vmatpush1.msra.mxu0 0.0
    %327 = vmatprep.subr.mxu0 0.0
    %328 = vmatpush1.msra.mxu0 0.0
    %329 = vmatprep.subr.mxu0 0.0
    %330 = vmatpush1.msra.mxu0 0.0
    %331 = vmatprep.subr.mxu0 0.0
    %332 = vmatpush1.msra.mxu0 0.0
    %333 = vmatprep.subr.mxu0 0.0
    %334 = vmatpush1.msra.mxu0 0.0
    %335 = vmatprep.subr.mxu0 0.0
    %336 = vmatpush1.msra.mxu0 0.0
    %337 = vmatprep.subr.mxu0 0.0
    %338 = vmatpush1.msra.mxu0 0.0
    %339 = vmatprep.subr.mxu0 0.0
    %340 = vmatpush1.msra.mxu0 0.0
    %341 = vmatprep.subr.mxu0 0.0
    %342 = vmatpush1.msra.mxu0 0.0
    %343 = vmatprep.subr.mxu0 0.0
    %344 = vmatpush1.msra.mxu0 0.0
    %345 = vmatprep.mubr.f32.mxu0 0.0
    %346 = vmatmul.mubr.f32.gmra.mrb[0].mxu0 %v279
    %v347 = vpop.f32.mrb[0].mxu0
    %v348 = vadd.f32 0.0, %v347
    %v349 = vpop.f32.mrb[0].mxu0
    %350 = vdwg.mxu0
    %v351 = vadd.f32 %v260, %v348
    %s352 = sld [smem:[#allocation3 + $0x3]]
    %v353 = vld [vmem:[#allocation8] sm:$0xff]
    %v354 = vld [vmem:[#allocation8 + $0x8] sm:$0x1]
    %v355 = vstv %s352
    %vm356 = vcmp.eq.s32.totalorder %v73, %v355
    %vm357 = vcmp.eq.s32.totalorder %v74, %v355
    %v358 = vsel %vm356, %v353, 0.0
    %v359 = vsel %vm357, %v354, 0.0
    %v360 = vsel %vm86, %v358, 0.0
    %vm361 = vcmask 122880
    %v362 = vsel %vm361, %v359, 0.0
    %v363 = vadd.f32 %v360, %v362
    %v364 = vrot.slane %v363, 4
    %v365 = vadd.f32 %v363, %v364
    %v366 = vrot.slane %v365, 2
    %v367 = vadd.f32 %v365, %v366
    %v368 = vrot.slane %v367, 1
    %v369 = vadd.f32 %v367, %v368
    %v370 = vld [vmem:[%s6 + $0x30] sm:$0xff]
    %v371 = vld [vmem:[%s6 + $0x38] sm:$0xff]
    %v373 = vsel %vm86, %v369, 0
    %375 = vmatprep.subr.mxu0 0.0
    %376 = vmatpush1.msra.mxu0 %v370
    %377 = vmatprep.subr.mxu0 0.0
    %378 = vmatpush1.msra.mxu0 %v371
    %379 = vmatprep.subr.mxu0 0.0
    %380 = vmatpush1.msra.mxu0 0.0
    %381 = vmatprep.subr.mxu0 0.0
    %382 = vmatpush1.msra.mxu0 0.0
    %383 = vmatprep.subr.mxu0 0.0
    %384 = vmatpush1.msra.mxu0 0.0
    %385 = vmatprep.subr.mxu0 0.0
    %386 = vmatpush1.msra.mxu0 0.0
    %387 = vmatprep.subr.mxu0 0.0
    %388 = vmatpush1.msra.mxu0 0.0
    %389 = vmatprep.subr.mxu0 0.0
    %390 = vmatpush1.msra.mxu0 0.0
    %391 = vmatprep.subr.mxu0 0.0
    %392 = vmatpush1.msra.mxu0 0.0
    %393 = vmatprep.subr.mxu0 0.0
    %394 = vmatpush1.msra.mxu0 0.0
    %395 = vmatprep.subr.mxu0 0.0
    %396 = vmatpush1.msra.mxu0 0.0
    %397 = vmatprep.subr.mxu0 0.0
    %398 = vmatpush1.msra.mxu0 0.0
    %399 = vmatprep.subr.mxu0 0.0
    %400 = vmatpush1.msra.mxu0 0.0
    %401 = vmatprep.subr.mxu0 0.0
    %402 = vmatpush1.msra.mxu0 0.0
    %403 = vmatprep.subr.mxu0 0.0
    %404 = vmatpush1.msra.mxu0 0.0
    %405 = vmatprep.subr.mxu0 0.0
    %406 = vmatpush1.msra.mxu0 0.0
    %407 = vmatprep.subr.mxu0 0.0
    %408 = vmatpush1.msra.mxu0 0.0
    %409 = vmatprep.subr.mxu0 0.0
    %410 = vmatpush1.msra.mxu0 0.0
    %411 = vmatprep.subr.mxu0 0.0
    %412 = vmatpush1.msra.mxu0 0.0
    %413 = vmatprep.subr.mxu0 0.0
    %414 = vmatpush1.msra.mxu0 0.0
    %415 = vmatprep.subr.mxu0 0.0
    %416 = vmatpush1.msra.mxu0 0.0
    %417 = vmatprep.subr.mxu0 0.0
    %418 = vmatpush1.msra.mxu0 0.0
    %419 = vmatprep.subr.mxu0 0.0
    %420 = vmatpush1.msra.mxu0 0.0
    %421 = vmatprep.subr.mxu0 0.0
    %422 = vmatpush1.msra.mxu0 0.0
    %423 = vmatprep.subr.mxu0 0.0
    %424 = vmatpush1.msra.mxu0 0.0
    %425 = vmatprep.subr.mxu0 0.0
    %426 = vmatpush1.msra.mxu0 0.0
    %427 = vmatprep.subr.mxu0 0.0
    %428 = vmatpush1.msra.mxu0 0.0
    %429 = vmatprep.subr.mxu0 0.0
    %430 = vmatpush1.msra.mxu0 0.0
    %431 = vmatprep.subr.mxu0 0.0
    %432 = vmatpush1.msra.mxu0 0.0
    %433 = vmatprep.subr.mxu0 0.0
    %434 = vmatpush1.msra.mxu0 0.0
    %435 = vmatprep.subr.mxu0 0.0
    %436 = vmatpush1.msra.mxu0 0.0
    %437 = vmatprep.subr.mxu0 0.0
    %438 = vmatpush1.msra.mxu0 0.0
    %439 = vmatprep.mubr.f32.mxu0 0.0
    %440 = vmatmul.mubr.f32.gmra.mrb[0].mxu0 %v373
    %v441 = vpop.f32.mrb[0].mxu0
    %v442 = vadd.f32 0.0, %v441
    %v443 = vpop.f32.mrb[0].mxu0
    %444 = vdwg.mxu0
    %v445 = vadd.f32 %v351, %v442
    %v446 = vld [vmem:[%s5] sm:$0x1]
    %v447 = vld [vmem:[%s6 + $0x40] sm:$0xff]
    %vm448 = vcmask 64512
    %v450 = vsel %vm448, %v446, 0
    %452 = vmatprep.subr.mxu0 0.0
    %453 = vmatpush1.msra.mxu0 %v447
    %454 = vmatprep.subr.mxu0 0.0
    %455 = vmatpush1.msra.mxu0 0.0
    %456 = vmatprep.subr.mxu0 0.0
    %457 = vmatpush1.msra.mxu0 0.0
    %458 = vmatprep.subr.mxu0 0.0
    %459 = vmatpush1.msra.mxu0 0.0
    %460 = vmatprep.subr.mxu0 0.0
    %461 = vmatpush1.msra.mxu0 0.0
    %462 = vmatprep.subr.mxu0 0.0
    %463 = vmatpush1.msra.mxu0 0.0
    %464 = vmatprep.subr.mxu0 0.0
    %465 = vmatpush1.msra.mxu0 0.0
    %466 = vmatprep.subr.mxu0 0.0
    %467 = vmatpush1.msra.mxu0 0.0
    %468 = vmatprep.subr.mxu0 0.0
    %469 = vmatpush1.msra.mxu0 0.0
    %470 = vmatprep.subr.mxu0 0.0
    %471 = vmatpush1.msra.mxu0 0.0
    %472 = vmatprep.subr.mxu0 0.0
    %473 = vmatpush1.msra.mxu0 0.0
    %474 = vmatprep.subr.mxu0 0.0
    %475 = vmatpush1.msra.mxu0 0.0
    %476 = vmatprep.subr.mxu0 0.0
    %477 = vmatpush1.msra.mxu0 0.0
    %478 = vmatprep.subr.mxu0 0.0
    %479 = vmatpush1.msra.mxu0 0.0
    %480 = vmatprep.subr.mxu0 0.0
    %481 = vmatpush1.msra.mxu0 0.0
    %482 = vmatprep.subr.mxu0 0.0
    %483 = vmatpush1.msra.mxu0 0.0
    %484 = vmatprep.subr.mxu0 0.0
    %485 = vmatpush1.msra.mxu0 0.0
    %486 = vmatprep.subr.mxu0 0.0
    %487 = vmatpush1.msra.mxu0 0.0
    %488 = vmatprep.subr.mxu0 0.0
    %489 = vmatpush1.msra.mxu0 0.0
    %490 = vmatprep.subr.mxu0 0.0
    %491 = vmatpush1.msra.mxu0 0.0
    %492 = vmatprep.subr.mxu0 0.0
    %493 = vmatpush1.msra.mxu0 0.0
    %494 = vmatprep.subr.mxu0 0.0
    %495 = vmatpush1.msra.mxu0 0.0
    %496 = vmatprep.subr.mxu0 0.0
    %497 = vmatpush1.msra.mxu0 0.0
    %498 = vmatprep.subr.mxu0 0.0
    %499 = vmatpush1.msra.mxu0 0.0
    %500 = vmatprep.subr.mxu0 0.0
    %501 = vmatpush1.msra.mxu0 0.0
    %502 = vmatprep.subr.mxu0 0.0
    %503 = vmatpush1.msra.mxu0 0.0
    %504 = vmatprep.subr.mxu0 0.0
    %505 = vmatpush1.msra.mxu0 0.0
    %506 = vmatprep.subr.mxu0 0.0
    %507 = vmatpush1.msra.mxu0 0.0
    %508 = vmatprep.subr.mxu0 0.0
    %509 = vmatpush1.msra.mxu0 0.0
    %510 = vmatprep.subr.mxu0 0.0
    %511 = vmatpush1.msra.mxu0 0.0
    %512 = vmatprep.subr.mxu0 0.0
    %513 = vmatpush1.msra.mxu0 0.0
    %514 = vmatprep.subr.mxu0 0.0
    %515 = vmatpush1.msra.mxu0 0.0
    %516 = vmatprep.mubr.f32.mxu0 0.0
    %517 = vmatmul.mubr.f32.gmra.mrb[0].mxu0 %v450
    %v518 = vpop.f32.mrb[0].mxu0
    %v519 = vadd.f32 0.0, %v518
    %v520 = vpop.f32.mrb[0].mxu0
    %521 = vdwg.mxu0
    %v522 = vadd.f32 %v445, %v519
    %v523 = vld [vmem:[%s7] sm:$0x1]
    %v524 = vadd.f32 %v522, %v523
    %v525 = vmax.f32 %v524, 0.0
    %v526 = vld [vmem:[%s8] sm:$0x1]
    %v527 = vmul.f32 %v525, %v526
    %vm528 = vcmask 1040384
    %v529 = vsel %vm528, %v527, 0.0
    %530 = vadd.xlane.f32.xlu0 %v529
    %v531 = vpop.xlane.xlu0 %530
    %s532 = sld [smem:[#allocation4]]
    %v533 = vstv %s532
    %v534 = vadd.f32 %v531, %v533
    %v535 = vxor.u32 %v534, 2147483648
    %v536 = vmul.f32 %v535, 1.442695
    %v537 = vpow.pop %v536
    %v538 = vadd.f32 %v537, 1.0
    %v539 = vrcp.pop %v538
    %v540 = vmul.f32 1.0, %v539
    %vm541 = vcmask 0
    %542 = vst.msk [vmem:[#allocation10] sm:$0x1] %vm541, %v540
    // Predicated region
    $region46: #{custom_model_forward.1} parent=1 // pred_check
      _
    $region47: #{custom_model_forward.1} parent=1 // pred_check_branch
      %544 = sbr.rel (0) target = $region49
    $region48: #{custom_model_forward.1} parent=1 // pred_region
      %s546 = ssub.s32 16, 16
      %547 = vsyncadd [#allocation7], %s546
      %s549 = sshll.u32 [#allocation10], 4
      %s550 = int_to_ptr.vmem [resolvable:$true] %s549
      %552 = dma.vmem_to_hbm [thread:$0]  %s550, 16, %s10, [#allocation7]
    $region49: #{custom_model_forward.1} parent=1 // pred_fallthru
      _
    // Predicated region
    $region50: #{custom_model_forward.1} parent=1 // pred_check
      _
    $region51: #{custom_model_forward.1} parent=1 // pred_check_branch
      %554 = sbr.rel (0) target = $region53
    $region52: #{custom_model_forward.1} parent=1 // pred_region
      %555 = dma.done [#allocation7], 16
    $region53: #{custom_model_forward.1} parent=1 // pred_fallthru
      _
    %556 = vsyncpa [#allocation6], 1
    %557 = vsyncpa [#allocation9], 1
    %558 = vsyncpa [#allocation7], 1

</llo_original>
